<compile_context>
chip_gen: v5e
topology: v5e:2x2
jax: 0.10.0
libtpu: 0.0.40
codegen_flags: <defaults>
</compile_context>

<pallas_src>
import functools

import jax
import jax.numpy as jnp
from jax.experimental import pallas as pl
from jax.experimental.pallas import tpu as pltpu

_LANES = 128
_SUBLANES = 8
# (2048, 128) f32 tile = 1 MiB; 2 inputs x 2 pipeline buffers = 4 MiB VMEM,
# comfortably inside default scoped VMEM on v5e (16 MiB), v6e (32 MiB), v7x (32 MiB).
_MAX_BLOCK_ROWS = 2048
_PAD_LOGIT = -200.0  # exp(-200) == 0.0 in f32 -> padded loss is exactly 0


def _blurred_bce(x, y, inv_alpha, approx_sigmoid):
    """Element-wise BCE-with-logits * alpha_factor on f32 tiles."""
    e = jnp.exp(-jnp.abs(x))  # shared by the stable-BCE log term and sigmoid
    # Numerically stable BCE-with-logits (reduction='none'):
    #   loss = max(x, 0) - x*y + log(1 + exp(-|x|))
    loss = jnp.maximum(x, 0.0) - x * y + jnp.log1p(e)

    one_plus_e = 1.0 + e
    if approx_sigmoid:
        inv_1pe = pl.reciprocal(one_plus_e, approx=True)  # EUP vrcp
    else:
        inv_1pe = 1.0 / one_plus_e
    # sigmoid(x): x>=0 -> 1/(1+e),  x<0 -> e/(1+e)   (e = exp(-|x|))
    p = jnp.where(x >= 0.0, inv_1pe, e * inv_1pe)

    dx = p - y
    alpha_factor = 1.0 - jnp.exp((dx - 1.0) * inv_alpha)
    return loss * alpha_factor


def _partial_sums(loss):
    """(block_rows, 128) -> (8, 128) per-lane partial sums (VALU-only adds)."""
    tiles = loss.reshape(-1, _SUBLANES, _LANES)  # splits sublane-major dim: no tile crossing
    return jnp.sum(tiles, axis=0)


def _bce_blur_single_kernel(pred_ref, true_ref, out_ref, *,
                            inv_alpha, inv_n, approx_sigmoid):
    """Whole problem fits in one block: no scratch, no init/finalize phases."""
    x = pred_ref[...].astype(jnp.float32)
    y = true_ref[...].astype(jnp.float32)
    loss = _blurred_bce(x, y, inv_alpha, approx_sigmoid)
    partial = _partial_sums(loss)                                   # (8, 128)
    out_ref[...] = jnp.sum(partial, axis=(0, 1), keepdims=True) * inv_n


def _bce_blur_grid_kernel(pred_ref, true_ref, out_ref, acc_ref, *,
                          inv_alpha, inv_n, approx_sigmoid):
    """Multi-step reduction with an (8,128) per-lane accumulator."""
    i = pl.program_id(0)

    @pl.when(i == 0)
    def _():
        acc_ref[...] = jnp.zeros_like(acc_ref)

    x = pred_ref[...].astype(jnp.float32)
    y = true_ref[...].astype(jnp.float32)
    loss = _blurred_bce(x, y, inv_alpha, approx_sigmoid)
    acc_ref[...] += _partial_sums(loss)  # per-lane partials; no XLU per step

    @pl.when(i == pl.num_programs(0) - 1)
    def _():
        # One-time cross-lane reduce in the epilogue.
        out_ref[...] = jnp.sum(acc_ref[...], axis=(0, 1), keepdims=True) * inv_n


def bce_blur_with_logits_loss(pred, true, alpha=0.05, *, use_approx_reciprocal=False):
    assert pred.shape == true.shape
    n = pred.size
    out_dtype = pred.dtype
    inv_alpha = 1.0 / (float(alpha) + 0.0001)  # constant-folded at trace time
    inv_n = 1.0 / float(n)

    rows = pl.cdiv(n, _LANES)
    if rows <= _MAX_BLOCK_ROWS:
        block_rows = pl.cdiv(rows, _SUBLANES) * _SUBLANES
        grid_steps = 1
    else:
        block_rows = _MAX_BLOCK_ROWS
        grid_steps = pl.cdiv(rows, block_rows)
    rows_padded = grid_steps * block_rows

    pred_f = pred.reshape(-1)
    true_f = true.reshape(-1)
    pad = rows_padded * _LANES - n
    if pad:
        # Padded logits of -200 with target 0 yield exactly-zero loss in f32,
        # so the kernel needs no padding mask anywhere.
        pred_f = jnp.pad(pred_f, (0, pad), constant_values=_PAD_LOGIT)
        true_f = jnp.pad(true_f, (0, pad), constant_values=0.0)
    pred_p = pred_f.reshape(rows_padded, _LANES)
    true_p = true_f.reshape(rows_padded, _LANES)

    common = dict(inv_alpha=inv_alpha, inv_n=inv_n,
                  approx_sigmoid=bool(use_approx_reciprocal))

    if grid_steps == 1:
        out = pl.pallas_call(
            functools.partial(_bce_blur_single_kernel, **common),
            out_shape=jax.ShapeDtypeStruct((1, 1), jnp.float32),
            grid_spec=pltpu.PrefetchScalarGridSpec(
                num_scalar_prefetch=0,
                grid=(1,),
                in_specs=[
                    pl.BlockSpec((block_rows, _LANES), lambda i: (0, 0)),
                    pl.BlockSpec((block_rows, _LANES), lambda i: (0, 0)),
                ],
                out_specs=pl.BlockSpec((1, 1), lambda i: (0, 0)),
            ),
            compiler_params=pltpu.CompilerParams(
                dimension_semantics=("arbitrary",)),
        )(pred_p, true_p)
    else:
        out = pl.pallas_call(
            functools.partial(_bce_blur_grid_kernel, **common),
            out_shape=jax.ShapeDtypeStruct((1, 1), jnp.float32),
            grid_spec=pltpu.PrefetchScalarGridSpec(
                num_scalar_prefetch=0,
                grid=(grid_steps,),
                in_specs=[
                    pl.BlockSpec((block_rows, _LANES), lambda i: (i, 0)),
                    pl.BlockSpec((block_rows, _LANES), lambda i: (i, 0)),
                ],
                out_specs=pl.BlockSpec((1, 1), lambda i: (0, 0)),
                scratch_shapes=[pltpu.VMEM((_SUBLANES, _LANES), jnp.float32)],
            ),
            compiler_params=pltpu.CompilerParams(
                dimension_semantics=("arbitrary",)),  # sequential reduction axis
        )(pred_p, true_p)

    return out[0, 0].astype(out_dtype)


def _reference(pred, true, alpha=0.05):
    x = pred.astype(jnp.float32)
    y = true.astype(jnp.float32)
    loss = jnp.maximum(x, 0.0) - x * y + jnp.log1p(jnp.exp(-jnp.abs(x)))
    p = jax.nn.sigmoid(x)
    dx = p - y
    alpha_factor = 1.0 - jnp.exp((dx - 1.0) / (alpha + 0.0001))
    return jnp.mean(loss * alpha_factor)


if __name__ == "__main__":
    key = jax.random.PRNGKey(0)
    k1, k2, k3, k4 = jax.random.split(key, 4)

    # NCHW logits / targets, as the loss would receive them in YOLOv5.
    pred = jax.random.normal(k1, (2, 4, 16, 16), dtype=jnp.float32)
    true = (jax.random.uniform(k2, (2, 4, 16, 16)) > 0.5).astype(jnp.float32)

    out = jax.block_until_ready(bce_blur_with_logits_loss(pred, true, alpha=0.05))
    ref = _reference(pred, true, alpha=0.05)
    assert jnp.allclose(out, ref, atol=1e-5, rtol=1e-5), (out, ref)

    # Exercise the multi-step grid kernel + zero-contribution padding path.
    pred2 = jax.random.normal(k3, (2, 64, 64, 63), dtype=jnp.float32)
    true2 = (jax.random.uniform(k4, (2, 64, 64, 63)) > 0.5).astype(jnp.float32)
    out2 = jax.block_until_ready(bce_blur_with_logits_loss(pred2, true2, alpha=0.05))
    ref2 = _reference(pred2, true2, alpha=0.05)
    assert jnp.allclose(out2, ref2, atol=1e-5, rtol=1e-4), (out2, ref2)

    # Optional EUP-friendly approximate-reciprocal sigmoid path.
    out3 = jax.block_until_ready(
        bce_blur_with_logits_loss(pred, true, alpha=0.05, use_approx_reciprocal=True))
    assert jnp.allclose(out3, ref, atol=1e-3, rtol=1e-3), (out3, ref)

    print("KERNEL_OK")
</pallas_src>

<mosaic_0001>
module attributes {stable_mosaic.version = 11 : i64} {
  func.func @_bce_blur_single_kernel(%arg0: i32, %arg1: memref<16x128xf32, #tpu.memory_space<vmem>>, %arg2: memref<16x128xf32, #tpu.memory_space<vmem>>, %arg3: memref<1x1xf32, #tpu.memory_space<vmem>>) attributes {dimension_semantics = [#tpu.dimension_semantics<arbitrary>], iteration_bounds = array<i64: 1>, scalar_prefetch = 0 : i64, scratch_operands = 0 : i64, tpu.core_type = #tpu.core_type<tc>, window_params = [{pipeline_mode = #tpu.pipeline_mode<synchronous>, transform_indices = @transform_0, window_bounds = array<i64: 16, 128>}, {pipeline_mode = #tpu.pipeline_mode<synchronous>, transform_indices = @transform_1, window_bounds = array<i64: 16, 128>}, {pipeline_mode = #tpu.pipeline_mode<synchronous>, transform_indices = @transform_2, window_bounds = array<i64: 1, 1>}]} {
    %c0 = arith.constant 0 : index
    %c0_0 = arith.constant 0 : index
    %0 = vector.load %arg1[%c0, %c0_0] : memref<16x128xf32, #tpu.memory_space<vmem>>, vector<16x128xf32>
    %c0_1 = arith.constant 0 : index
    %c0_2 = arith.constant 0 : index
    %1 = vector.load %arg2[%c0_1, %c0_2] : memref<16x128xf32, #tpu.memory_space<vmem>>, vector<16x128xf32>
    %2 = math.absf %0 : vector<16x128xf32>
    %cst = arith.constant 0.000000e+00 : f32
    %3 = vector.broadcast %cst : f32 to vector<16x128xf32>
    %4 = arith.subf %3, %2 : vector<16x128xf32>
    %5 = math.exp %4 : vector<16x128xf32>
    %cst_3 = arith.constant 0.000000e+00 : f32
    %6 = vector.broadcast %cst_3 : f32 to vector<16x128xf32>
    %7 = arith.maximumf %0, %6 : vector<16x128xf32>
    %8 = arith.mulf %0, %1 : vector<16x128xf32>
    %9 = arith.subf %7, %8 : vector<16x128xf32>
    %10 = math.log1p %5 : vector<16x128xf32>
    %11 = arith.addf %9, %10 : vector<16x128xf32>
    %cst_4 = arith.constant 1.000000e+00 : f32
    %12 = vector.broadcast %cst_4 : f32 to vector<16x128xf32>
    %13 = arith.addf %12, %5 : vector<16x128xf32>
    %cst_5 = arith.constant 1.000000e+00 : f32
    %14 = vector.broadcast %cst_5 : f32 to vector<16x128xf32>
    %15 = arith.divf %14, %13 : vector<16x128xf32>
    %cst_6 = arith.constant 0.000000e+00 : f32
    %16 = vector.broadcast %cst_6 : f32 to vector<16x128xf32>
    %17 = arith.cmpf oge, %0, %16 : vector<16x128xf32>
    %18 = arith.mulf %5, %15 : vector<16x128xf32>
    %19 = arith.select %17, %15, %18 : vector<16x128xi1>, vector<16x128xf32>
    %20 = arith.subf %19, %1 : vector<16x128xf32>
    %cst_7 = arith.constant 1.000000e+00 : f32
    %21 = vector.broadcast %cst_7 : f32 to vector<16x128xf32>
    %22 = arith.subf %20, %21 : vector<16x128xf32>
    %cst_8 = arith.constant 19.9600792 : f32
    %23 = vector.broadcast %cst_8 : f32 to vector<16x128xf32>
    %24 = arith.mulf %22, %23 : vector<16x128xf32>
    %25 = math.exp %24 : vector<16x128xf32>
    %cst_9 = arith.constant 1.000000e+00 : f32
    %26 = vector.broadcast %cst_9 : f32 to vector<16x128xf32>
    %27 = arith.subf %26, %25 : vector<16x128xf32>
    %28 = arith.mulf %11, %27 : vector<16x128xf32>
    %29 = vector.shape_cast %28 : vector<16x128xf32> to vector<2x8x128xf32>
    %cst_10 = arith.constant dense<0.000000e+00> : vector<8x128xf32>
    %30 = vector.multi_reduction <add>, %29, %cst_10 [0] : vector<2x8x128xf32> to vector<8x128xf32>
    %31 = vector.shape_cast %30 : vector<8x128xf32> to vector<1x8x128xf32>
    %cst_11 = arith.constant dense<0.000000e+00> : vector<1xf32>
    %32 = vector.multi_reduction <add>, %31, %cst_11 [1, 2] : vector<1x8x128xf32> to vector<1xf32>
    %33 = vector.shape_cast %32 : vector<1xf32> to vector<1x1x1xf32>
    %34 = vector.extract %33[0, 0, 0] : f32 from vector<1x1x1xf32>
    %35 = vector.broadcast %34 : f32 to vector<1x1xf32>
    %cst_12 = arith.constant 4.8828125E-4 : f32
    %36 = vector.broadcast %cst_12 : f32 to vector<1x1xf32>
    %37 = arith.mulf %35, %36 : vector<1x1xf32>
    %c0_13 = arith.constant 0 : index
    %c0_14 = arith.constant 0 : index
    %38 = vector.load %arg3[%c0_13, %c0_14] : memref<1x1xf32, #tpu.memory_space<vmem>>, vector<1x1xf32>
    tpu.vector_store %arg3[%c0_13, %c0_14], %37 {strides = array<i32>} : memref<1x1xf32, #tpu.memory_space<vmem>>, vector<1x1xf32>,
    return
  }
  func.func @transform_0(%arg0: i32) -> (i32, i32) {
    %c0_i32 = arith.constant 0 : i32
    %c0_i32_0 = arith.constant 0 : i32
    %c0_i32_1 = arith.constant 0 : i32
    return %c0_i32, %c0_i32_0 : i32, i32
  }
  func.func @transform_1(%arg0: i32) -> (i32, i32) {
    %c0_i32 = arith.constant 0 : i32
    %c0_i32_0 = arith.constant 0 : i32
    %c0_i32_1 = arith.constant 0 : i32
    return %c0_i32, %c0_i32_0 : i32, i32
  }
  func.func @transform_2(%arg0: i32) -> (i32, i32) {
    %c0_i32 = arith.constant 0 : i32
    %c0_i32_0 = arith.constant 0 : i32
    %c0_i32_1 = arith.constant 0 : i32
    return %c0_i32, %c0_i32_0 : i32, i32
  }
}

</mosaic_0001>

<llo_original>
// kernel: tpu_custom_call.1
$region0: #{tpu_custom_call.1}
  #allocation0 [shape = 'u32[]', space=smem, size = 0x4, offset = 0x4, fixed_abs, tag = 'smem constant byte address 0x4 - core index']
  #allocation1 [shape = 'u32[72,128]{1,0:T(1,128)}', space=vmem, size = 0x9000, scoped, tag = 'internal scratch']
  %s0 = inlined_call_operand.hbm [shape: f32[16,128], index: 0, kind: input, shape index: {}]
  %s1 = inlined_call_operand.hbm [shape: f32[16,128], index: 1, kind: input, shape index: {}]
  %s2 = inlined_call_operand.hbm [shape: f32[1,1], index: 2, kind: output, shape index: {}]
  %s3 = sld [smem:[#allocation0]]
  $region26: #{tpu_custom_call.1} parent=0
    _
  %s5 = ssub.s32 1, %s3
  %s6 = scalar_select 0, %s5, %s3
  $region1: #{tpu_custom_call.1} parent=0
    #allocation2 [shape = 'u8[8192]{0}', space=vmem, size = 0x2000, scoped, tag = 'input window, operand 0, single buffered']
    #allocation3 [shape = 's32[1]{0}', space=sflag, size = 0x4, scoped, tag = 'scoped memory for tpu_custom_call.1']
    #allocation4 [shape = 's32[1]{0}', space=sflag, size = 0x4, scoped, tag = 'scoped memory for tpu_custom_call.1']
    #allocation5 [shape = 'u8[8192]{0}', space=vmem, size = 0x2000, scoped, tag = 'input window, operand 1, single buffered']
    #allocation6 [shape = 's32[1]{0}', space=sflag, size = 0x4, scoped, tag = 'scoped memory for tpu_custom_call.1']
    #allocation7 [shape = 'u8[512]{0}', space=vmem, size = 0x400, scoped, tag = 'output window, operand 0, single buffered']
    %7 = vsyncpa [#allocation3], 0
    %8 = vsyncpa [#allocation6], 0
    %9 = vsyncpa [#allocation4], 0
    // Predicated region
    $region2: #{tpu_custom_call.1} parent=1 // pred_check
      _
    $region3: #{tpu_custom_call.1} parent=1 // pred_check_branch
      %11 = sbr.rel (0) target = $region5
    $region4: #{tpu_custom_call.1} parent=1 // pred_region
      %13 = vsyncadd [#allocation3], 0
      %s14 = sshll.u32 %s0, 4
      %s15 = int_to_ptr.hbm [resolvable:$true] %s14
      %s16 = sshll.u32 [#allocation2], 4
      %s17 = int_to_ptr.vmem [resolvable:$true] %s16
      %22 = dma.hbm_to_vmem [thread:$0]  %s15, 256, %s17, [#allocation3], 128, 128, 8
    $region5: #{tpu_custom_call.1} parent=1 // pred_fallthru
      _
    // Predicated region
    $region6: #{tpu_custom_call.1} parent=1 // pred_check
      _
    $region7: #{tpu_custom_call.1} parent=1 // pred_check_branch
      %24 = sbr.rel (0) target = $region9
    $region8: #{tpu_custom_call.1} parent=1 // pred_region
      %26 = vsyncadd [#allocation6], 0
      %s27 = sshll.u32 %s1, 4
      %s28 = int_to_ptr.hbm [resolvable:$true] %s27
      %s29 = sshll.u32 [#allocation5], 4
      %s30 = int_to_ptr.vmem [resolvable:$true] %s29
      %35 = dma.hbm_to_vmem [thread:$0]  %s28, 256, %s30, [#allocation6], 128, 128, 8
    $region9: #{tpu_custom_call.1} parent=1 // pred_fallthru
      _
    // Predicated region
    $region10: #{tpu_custom_call.1} parent=1 // pred_check
      _
    $region11: #{tpu_custom_call.1} parent=1 // pred_check_branch
      %37 = sbr.rel (0) target = $region13
    $region12: #{tpu_custom_call.1} parent=1 // pred_region
      %39 = dma.done [#allocation3], 256
    $region13: #{tpu_custom_call.1} parent=1 // pred_fallthru
      _
    // Predicated region
    $region14: #{tpu_custom_call.1} parent=1 // pred_check
      _
    $region15: #{tpu_custom_call.1} parent=1 // pred_check_branch
      %41 = sbr.rel (0) target = $region17
    $region16: #{tpu_custom_call.1} parent=1 // pred_region
      %43 = dma.done [#allocation6], 256
    $region17: #{tpu_custom_call.1} parent=1 // pred_fallthru
      _
    %v44 = vld [vmem:[#allocation2] sm:$0xff]
    %v45 = vld [vmem:[#allocation2 + $0x8] sm:$0xff]
    %v46 = vld [vmem:[#allocation5] sm:$0xff]
    %v47 = vld [vmem:[#allocation5 + $0x8] sm:$0xff]
    %v48 = vand.u32 2147483647, %v44
    %v49 = vand.u32 2147483647, %v45
    %v50 = vsub.f32 0.0, %v48
    %v51 = vsub.f32 0.0, %v49
    %v52 = vmul.f32 %v50, 1.442695
    %v53 = vpow.pop %v52
    %v54 = vmul.f32 %v51, 1.442695
    %v55 = vpow.pop %v54
    %v56 = vmax.f32 %v44, 0.0
    %v57 = vmax.f32 %v45, 0.0
    %v58 = vmul.f32 %v44, %v46
    %v59 = vmul.f32 %v45, %v47
    %v60 = vsub.f32 %v56, %v58
    %v61 = vsub.f32 %v57, %v59
    %v62 = vadd.f32 %v53, 1.0
    %v63 = vlog2.pop %v62
    %v64 = vmul.f32 %v63, 0.6931472
    %v65 = vmul.f32 -0.5, %v53
    %v66 = vadd.f32 %v65, 1.0
    %v67 = vmul.f32 %v66, %v53
    %v68 = vand.u32 2147483647, %v53
    %vm69 = vcmp.lt.f32.partialorder %v68, 0.0004427343
    %v70 = vsel %vm69, %v67, %v64
    %v71 = vadd.f32 %v55, 1.0
    %v72 = vlog2.pop %v71
    %v73 = vmul.f32 %v72, 0.6931472
    %v74 = vmul.f32 -0.5, %v55
    %v75 = vadd.f32 %v74, 1.0
    %v76 = vmul.f32 %v75, %v55
    %v77 = vand.u32 2147483647, %v55
    %vm78 = vcmp.lt.f32.partialorder %v77, 0.0004427343
    %v79 = vsel %vm78, %v76, %v73
    %v80 = vadd.f32 %v60, %v70
    %v81 = vadd.f32 %v61, %v79
    %v82 = vadd.f32 %v53, 1.0
    %v83 = vadd.f32 %v55, 1.0
    %v84 = vrcp.pop %v82
    %v85 = vmul.f32 %v82, %v84
    %v86 = vsub.f32 1.0, %v85
    %v87 = vmul.f32 %v84, %v86
    %v88 = vadd.f32 %v84, %v87
    %vm89 = vweird.f32 %v82
    %vm90 = vweird.f32 %v84
    %vm91 = vmor %vm89, %vm90
    %v92 = vsel %vm91, %v84, %v88
    %v93 = vand.u32 2147483647, %v82
    %vm94 = vcmp.eq.f32.partialorder %v93, 8.507059e+37
    %v95 = vand.u32 %v82, 2147483648
    %v96 = vor.u32 1.1754944e-38, %v95
    %v97 = vsel %vm94, %v96, %v92
    %v98 = vmul.f32 1.0, %v97
    %v99 = vrcp.pop %v83
    %v100 = vmul.f32 %v83, %v99
    %v101 = vsub.f32 1.0, %v100
    %v102 = vmul.f32 %v99, %v101
    %v103 = vadd.f32 %v99, %v102
    %vm104 = vweird.f32 %v83
    %vm105 = vweird.f32 %v99
    %vm106 = vmor %vm104, %vm105
    %v107 = vsel %vm106, %v99, %v103
    %v108 = vand.u32 2147483647, %v83
    %vm109 = vcmp.eq.f32.partialorder %v108, 8.507059e+37
    %v110 = vand.u32 %v83, 2147483648
    %v111 = vor.u32 1.1754944e-38, %v110
    %v112 = vsel %vm109, %v111, %v107
    %v113 = vmul.f32 1.0, %v112
    %vm114 = vcmp.ge.f32.partialorder %v44, 0.0
    %vm115 = vcmp.ge.f32.partialorder %v45, 0.0
    %v116 = vmul.f32 %v53, %v98
    %v117 = vmul.f32 %v55, %v113
    %v118 = vsel %vm114, %v98, %v116
    %v119 = vsel %vm115, %v113, %v117
    %v120 = vsub.f32 %v118, %v46
    %v121 = vsub.f32 %v119, %v47
    %v122 = vsub.f32 %v120, 1.0
    %v123 = vsub.f32 %v121, 1.0
    %v124 = vmul.f32 %v122, 19.96008
    %v125 = vmul.f32 %v123, 19.96008
    %v126 = vmul.f32 %v124, 1.442695
    %v127 = vpow.pop %v126
    %v128 = vmul.f32 %v125, 1.442695
    %v129 = vpow.pop %v128
    %v130 = vsub.f32 1.0, %v127
    %v131 = vsub.f32 1.0, %v129
    %v132 = vmul.f32 %v80, %v130
    %v133 = vmul.f32 %v81, %v131
    %v134 = vadd.f32 %v132, %v133
    %135 = vadd.xlane.f32.xlu0 %v134
    %v136 = vpop.xlane.xlu0 %135
    %v137 = vrot.slane %v136, 4
    %v138 = vadd.f32 %v136, %v137
    %v139 = vrot.slane %v138, 2
    %v140 = vadd.f32 %v138, %v139
    %v141 = vrot.slane %v140, 1
    %v142 = vadd.f32 %v140, %v141
    %s143 = vtos %v142
    %v144 = vstv %s143
    %v145 = vmul.f32 %v144, 0.00048828125
    %vm146 = vcmask 0
    %147 = vst.msk [vmem:[#allocation7] sm:$0x1] %vm146, %v145
    // Predicated region
    $region18: #{tpu_custom_call.1} parent=1 // pred_check
      _
    $region19: #{tpu_custom_call.1} parent=1 // pred_check_branch
      %149 = sbr.rel (0) target = $region21
    $region20: #{tpu_custom_call.1} parent=1 // pred_region
      %151 = vsyncadd [#allocation4], 0
      %s153 = sshll.u32 [#allocation7], 4
      %s154 = int_to_ptr.vmem [resolvable:$true] %s153
      %s155 = sshll.u32 %s2, 4
      %s156 = int_to_ptr.hbm [resolvable:$true] %s155
      %158 = dma.vmem_to_hbm [thread:$0]  %s154, 16, %s156, [#allocation4]
    $region21: #{tpu_custom_call.1} parent=1 // pred_fallthru
      _
    // Predicated region
    $region22: #{tpu_custom_call.1} parent=1 // pred_check
      _
    $region23: #{tpu_custom_call.1} parent=1 // pred_check_branch
      %160 = sbr.rel (0) target = $region25
    $region24: #{tpu_custom_call.1} parent=1 // pred_region
      %162 = dma.done [#allocation4], 16
    $region25: #{tpu_custom_call.1} parent=1 // pred_fallthru
      _
    %163 = vsyncpa [#allocation3], 1
    %164 = vsyncpa [#allocation6], 1
    %165 = vsyncpa [#allocation4], 1

</llo_original>
